<compile_context>
chip_gen: v5e
topology: v5e:2x2
jax: 0.10.0
libtpu: 0.0.40
codegen_flags: <defaults>
</compile_context>

<pallas_src>
import functools
import math

import jax
import jax.numpy as jnp
from jax.experimental import pallas as pl
from jax.experimental.pallas import tpu as pltpu


# ----------------------------------------------------------------------------
# Fused mapping network kernel (all Linear + LeakyReLU layers in one call)
# ----------------------------------------------------------------------------
def _make_mapping_kernel(num_layers):
    def kernel(*refs):
        z_ref = refs[0]
        out_ref = refs[-1]
        w = z_ref[...]
        for i in range(num_layers):
            wt = refs[1 + 2 * i][...]          # (din, dout)
            b = refs[2 + 2 * i][...]           # (1, dout)
            w = jnp.dot(w, wt, preferred_element_type=jnp.float32) + b
            w = jnp.where(w >= 0.0, w, 0.2 * w)    # LeakyReLU(0.2) every layer
        out_ref[...] = w
    return kernel


def mapping_network(z, layers):
    """z: [N, z_dim]; layers: list of (W_t [din,dout], b [dout]) -> [N, dout_last]."""
    n = z.shape[0]
    dout = layers[-1][0].shape[1]
    args = [z.astype(jnp.float32)]
    for wt, b in layers:
        args.append(wt.astype(jnp.float32))
        args.append(b.reshape(1, -1).astype(jnp.float32))
    return pl.pallas_call(
        _make_mapping_kernel(len(layers)),
        out_shape=jax.ShapeDtypeStruct((n, dout), jnp.float32),
    )(*args)


# ----------------------------------------------------------------------------
# Fused point pipeline kernel: FiLM stack + heads + alpha compositing
# (batched over the K depth samples of a ray tile)
# ----------------------------------------------------------------------------
def _point_kernel(pts_ref, dirs_ref, freqs_ref, phases_ref,
                  f0w_ref, f0b_ref, fw_ref, fb_ref,
                  rwx_ref, rwd_ref, rb_ref,
                  sw_ref, sb_ref, cw_ref, cb_ref,
                  out_ref, *, L, K, delta, cdt):
    tile_r = out_ref.shape[2]

    # --- per-tile hoists ------------------------------------------------
    # All K depth samples lane-concatenated k-major:  xs[:, k*T:(k+1)*T]
    # (the UniformBoxWarp scale is folded into f0w in the wrapper).
    xs = jnp.concatenate([pts_ref[0, k] for k in range(K)], axis=-1)   # (3, K*T)
    xs = xs.astype(cdt)

    # View-direction contribution of the rgb FiLM layer: computed once per
    # ray tile (dirs are per-ray) and replicated along lanes for all K.
    dirs_t = dirs_ref[0].astype(cdt)                                   # (3, T)
    dir_part = jnp.dot(rwd_ref[...], dirs_t,
                       preferred_element_type=jnp.float32)             # (C, T)
    dir_part = jnp.concatenate([dir_part] * K, axis=-1)                # (C, K*T)

    # Per-batch style columns (tiny, loaded once).
    freq_cols = [freqs_ref[0, :, l:l + 1] for l in range(L + 1)]       # (C, 1) f32
    phase_cols = [phases_ref[0, :, l:l + 1] for l in range(L + 1)]

    # --- FiLM stack, batched over all K depth samples --------------------
    y = jnp.dot(f0w_ref[...], xs, preferred_element_type=jnp.float32) + f0b_ref[...]
    x = jnp.sin(freq_cols[0] * y + phase_cols[0])                      # (C, K*T) f32
    for l in range(1, L):
        y = jnp.dot(fw_ref[l - 1], x.astype(cdt),
                    preferred_element_type=jnp.float32) + fb_ref[l - 1]
        x = jnp.sin(freq_cols[l] * y + phase_cols[l])

    xc = x.astype(cdt)
    # Sigma head.
    sigma = jnp.dot(sw_ref[...], xc, preferred_element_type=jnp.float32) + sb_ref[...]  # (1, K*T)
    # RGB FiLM (uses wp[:, L]); dirs contribution pre-computed above.
    y = jnp.dot(rwx_ref[...], xc, preferred_element_type=jnp.float32) + dir_part + rb_ref[...]
    h = jnp.sin(freq_cols[L] * y + phase_cols[L])                      # (C, K*T)
    # RGB head + sigmoid.
    rgb = jax.nn.sigmoid(
        jnp.dot(cw_ref[...], h.astype(cdt), preferred_element_type=jnp.float32)
        + cb_ref[...])                                                  # (3, K*T)

    # --- compositing over depth ------------------------------------------
    # TODO(synk): the original Renderer is external; standard NeRF-style
    # alpha compositing (ReLU on sigma, constant step size) is used here.
    acc = jnp.zeros((3, tile_r), jnp.float32)
    trans = jnp.ones((1, tile_r), jnp.float32)
    for k in range(K):
        sig_k = sigma[:, k * tile_r:(k + 1) * tile_r]                  # (1, T)
        rgb_k = rgb[:, k * tile_r:(k + 1) * tile_r]                    # (3, T)
        alpha = 1.0 - jnp.exp(-jnp.maximum(sig_k, 0.0) * delta)
        wgt = alpha * trans
        acc = acc + wgt * rgb_k
        trans = trans * (1.0 - alpha)

    out_ref[0] = acc                                                   # (3, T)


def _pick_tile_rays(r, max_tile=2048):
    if r <= 128:
        return r
    best = None
    t = 128
    while t <= min(r, max_tile):
        if r % t == 0:
            best = t
        t += 128
    return best if best is not None else r


def pigan_points(params, pts, dirs, freqs, phases, delta, cfg, tile_rays=None,
                 compute_dtype=jnp.bfloat16):
    """Fused FiLM stack + heads + compositing.

    pts:   [N, K, 3, R]  (depth-sample-major point slabs, channel x ray)
    dirs:  [N, 3, R]
    freqs: [N, C, L+1], phases: [N, C, L+1]
    returns composite rgb as [N, 3, R] (lane-dense channel planes).
    """
    n, num_k, _, num_r = pts.shape
    C = cfg["syn_out"]
    L = cfg["syn_layers"]
    assert L >= 2
    if tile_rays is None:
        tile_rays = _pick_tile_rays(num_r)
    assert num_r % tile_rays == 0
    assert tile_rays % 128 == 0 or tile_rays == num_r

    cdt = compute_dtype
    kernel = functools.partial(_point_kernel, L=L, K=num_k,
                               delta=float(delta), cdt=cdt)

    # Matmul weights in bf16 (MXU operands); biases / styles stay f32.
    # UniformBoxWarp scale folded into the first FiLM weight.
    scale = 2.0 / cfg["grid_scale"]
    f0w = (params["film0_w"] * scale).astype(cdt)       # (C, 3)
    f0b = params["film0_b"].reshape(C, 1).astype(jnp.float32)
    fw = params["film_w"].astype(cdt)                   # (L-1, C, C)
    fb = params["film_b"].reshape(L - 1, C, 1).astype(jnp.float32)
    rwx = params["rgbf_wx"].astype(cdt)                 # (C, C)
    rwd = params["rgbf_wd"].astype(cdt)                 # (C, 3)
    rb = params["rgbf_b"].reshape(C, 1).astype(jnp.float32)
    sw = params["sig_w"].astype(cdt)                    # (1, C)
    sb = params["sig_b"].reshape(1, 1).astype(jnp.float32)
    cw = params["rgb_w"].astype(cdt)                    # (3, C)
    cb = params["rgb_b"].reshape(3, 1).astype(jnp.float32)

    grid = (n, num_r // tile_rays)
    return pl.pallas_call(
        kernel,
        out_shape=jax.ShapeDtypeStruct((n, 3, num_r), jnp.float32),
        grid=grid,
        in_specs=[
            pl.BlockSpec((1, num_k, 3, tile_rays), lambda i, t: (i, 0, 0, t)),  # pts
            pl.BlockSpec((1, 3, tile_rays), lambda i, t: (i, 0, t)),        # dirs
            pl.BlockSpec((1, C, L + 1), lambda i, t: (i, 0, 0)),            # freqs
            pl.BlockSpec((1, C, L + 1), lambda i, t: (i, 0, 0)),            # phases
            pl.BlockSpec((C, 3), lambda i, t: (0, 0)),                      # film0 W (scaled)
            pl.BlockSpec((C, 1), lambda i, t: (0, 0)),                      # film0 b
            pl.BlockSpec((L - 1, C, C), lambda i, t: (0, 0, 0)),            # film W
            pl.BlockSpec((L - 1, C, 1), lambda i, t: (0, 0, 0)),            # film b
            pl.BlockSpec((C, C), lambda i, t: (0, 0)),                      # rgb film W_x
            pl.BlockSpec((C, 3), lambda i, t: (0, 0)),                      # rgb film W_dirs
            pl.BlockSpec((C, 1), lambda i, t: (0, 0)),                      # rgb film b
            pl.BlockSpec((1, C), lambda i, t: (0, 0)),                      # sigma W
            pl.BlockSpec((1, 1), lambda i, t: (0, 0)),                      # sigma b
            pl.BlockSpec((3, C), lambda i, t: (0, 0)),                      # rgb head W
            pl.BlockSpec((3, 1), lambda i, t: (0, 0)),                      # rgb head b
        ],
        out_specs=pl.BlockSpec((1, 3, tile_rays), lambda i, t: (i, 0, t)),
        compiler_params=pltpu.CompilerParams(
            dimension_semantics=("parallel", "parallel")),
    )(pts, dirs, freqs, phases,
      f0w, f0b, fw, fb, rwx, rwd, rb, sw, sb, cw, cb)


# ----------------------------------------------------------------------------
# Deterministic parameter init (matches PyTorch init *schemes*, synthetic values)
# ----------------------------------------------------------------------------
def init_params(key, cfg):
    keys = iter(jax.random.split(key, 64))
    z_dim, wd = cfg["z_dim"], cfg["w_dim"]
    L, C = cfg["syn_layers"], cfg["syn_out"]
    hid = cfg["map_hidden"]
    cin0 = cfg["syn_in"]
    map_out = wd * (L + 1)          # repeat_w=False -> output_dim * num_outputs

    def kaiming_t(k, fan_in, fan_out, scale=1.0):     # (in, out) orientation
        std = math.sqrt(2.0 / (1.0 + 0.2 ** 2)) / math.sqrt(fan_in)
        return jax.random.normal(k, (fan_in, fan_out), jnp.float32) * std * scale

    def uniform_oi(k, fan_out, fan_in, bound):        # (out, in) orientation
        return jax.random.uniform(k, (fan_out, fan_in), jnp.float32, -bound, bound)

    def bias(k, fan_in, fan_out):
        b = 1.0 / math.sqrt(fan_in)
        return jax.random.uniform(k, (fan_out,), jnp.float32, -b, b)

    # Mapping network (Linear + LeakyReLU every layer).
    dims = [z_dim] + [hid] * (cfg["map_layers"] - 1) + [map_out]
    mapping = []
    for i in range(cfg["map_layers"]):
        din, dout = dims[i], dims[i + 1]
        mapping.append((kaiming_t(next(keys), din, dout),
                        bias(next(keys), din, dout)))

    # Style Linears, stacked over L (FiLM) + 1 (rgb_film): kaiming a=0.2 * 0.25.
    style_w = jnp.stack([kaiming_t(next(keys), wd, 2 * C, scale=0.25)
                         for _ in range(L + 1)])
    style_b = jnp.stack([bias(next(keys), wd, 2 * C) for _ in range(L + 1)])

    # FiLM layer 0 (first_film_init): uniform(+-1/in), in = 3.
    film0_w = uniform_oi(next(keys), C, cin0, 1.0 / cin0)
    film0_b = bias(next(keys), cin0, C)
    # FiLM layers 1..L-1 (freq_init(25)).
    film_w = jnp.stack([uniform_oi(next(keys), C, C, math.sqrt(6.0 / C) / 25.0)
                        for _ in range(L - 1)])
    film_b = jnp.stack([bias(next(keys), C, C) for _ in range(L - 1)])

    # rgb FiLM layer: input dim C+3, split into W_x (C,C) and W_dirs (C,3).
    fan = C + 3
    rgbf_full = uniform_oi(next(keys), C, fan, math.sqrt(6.0 / fan) / 25.0)
    rgbf_b = bias(next(keys), fan, C)

    sig_w = uniform_oi(next(keys), 1, C, math.sqrt(6.0 / C) / 25.0)
    sig_b = bias(next(keys), C, 1)
    rgb_w = uniform_oi(next(keys), 3, C, math.sqrt(6.0 / C) / 25.0)
    rgb_b = bias(next(keys), C, 3)

    return dict(mapping=mapping, style_w=style_w, style_b=style_b,
                film0_w=film0_w, film0_b=film0_b,
                film_w=film_w, film_b=film_b,
                rgbf_wx=rgbf_full[:, :C], rgbf_wd=rgbf_full[:, C:], rgbf_b=rgbf_b,
                sig_w=sig_w, sig_b=sig_b, rgb_w=rgb_w, rgb_b=rgb_b)


# ----------------------------------------------------------------------------
# Ray generation glue (the original Renderer class is external / undefined)
# ----------------------------------------------------------------------------
def make_rays(n, res, k):
    # TODO(synk): exact camera/ray sampling lives in the undefined Renderer;
    # deterministic pinhole rays with uniform depth samples are used instead.
    lin = jnp.linspace(-1.0, 1.0, res)
    jj, ii = jnp.meshgrid(lin, lin, indexing="xy")
    d = jnp.stack([jj, -ii, jnp.ones_like(ii)], axis=-1)          # (res,res,3)
    d = d / jnp.linalg.norm(d, axis=-1, keepdims=True)
    d_flat = d.reshape(res * res, 3)                              # (R, 3)

    near, far = 0.88, 1.12                                        # ~pi-GAN near/far
    depths = jnp.linspace(near, far, k)
    origin = jnp.array([0.0, 0.0, -1.0], jnp.float32)

    # Depth-sample-major layout: pts[k, c, r] = origin[c] + depth[k] * dir[r, c]
    pts = origin[None, :, None] + depths[:, None, None] * d_flat.T[None, :, :]  # (K,3,R)
    dirs = d_flat.T                                               # (3, R)

    r = res * res
    pts = jnp.broadcast_to(pts[None], (n, k, 3, r)).astype(jnp.float32)
    dirs = jnp.broadcast_to(dirs[None], (n, 3, r)).astype(jnp.float32)
    delta = (far - near) / max(k - 1, 1)                          # pure Python
    return pts, dirs, float(delta)


# ----------------------------------------------------------------------------
# Forward pass
# ----------------------------------------------------------------------------
def pigan_forward(params, z, pts, dirs, delta, cfg, tile_rays=None):
    n = z.shape[0]
    L, wd, C = cfg["syn_layers"], cfg["w_dim"], cfg["syn_out"]

    # --- MappingNetwork (normalize_z=False, label_dim=0, repeat_w=False) ---
    w = mapping_network(z, params["mapping"])                      # (N, wd*(L+1))
    wp = w.reshape(n, L + 1, wd)

    # --- All L+1 style Linears as one batched matmul ---
    styles = jnp.einsum("nld,ldc->nlc", wp, params["style_w"]) + params["style_b"][None]
    freqs = jnp.transpose(styles[..., :C] * 15.0 + 30.0, (0, 2, 1))   # (N, C, L+1)
    phases = jnp.transpose(styles[..., C:], (0, 2, 1))                # (N, C, L+1)

    # --- Fused MLPNetwork + FCHead + volume compositing ---
    comp = pigan_points(params, pts, dirs, freqs, phases, delta, cfg,
                        tile_rays=tile_rays)                          # (N, 3, R)

    res = cfg["resolution"]
    image = comp.reshape(n, 3, res, res)                              # NCHW, no transpose

    # TODO(synk): camera angles are sampled inside the external Renderer; fixed
    # deterministic polar/azimuthal are reported instead.
    cam_polar = jnp.full((n, 1), math.pi / 2, jnp.float32)
    cam_azimuth = jnp.full((n, 1), math.pi / 2, jnp.float32)
    camera = jnp.concatenate([cam_polar, cam_azimuth], axis=-1)

    return {"z": z, "label": None, "w": w, "wp": wp,
            "image": image, "camera": camera, "latent": z}


# ----------------------------------------------------------------------------
if __name__ == "__main__":
    cfg = dict(z_dim=32, w_dim=32, map_layers=3, map_hidden=32,
               syn_layers=4, syn_in=3, syn_out=32,
               grid_scale=0.24, resolution=16, num_samples=4)

    key = jax.random.PRNGKey(0)
    pkey, zkey = jax.random.split(key)
    params = init_params(pkey, cfg)

    batch = 2
    z = jax.random.normal(zkey, (batch, cfg["z_dim"]), jnp.float32)
    pts, dirs, delta = make_rays(batch, cfg["resolution"], cfg["num_samples"])

    out = pigan_forward(params, z, pts, dirs, delta, cfg, tile_rays=128)
    jax.block_until_ready(out["image"])
    jax.block_until_ready(out["camera"])

    assert out["image"].shape == (batch, 3, cfg["resolution"], cfg["resolution"])
    assert out["wp"].shape == (batch, cfg["syn_layers"] + 1, cfg["w_dim"])
    assert out["w"].shape == (batch, cfg["w_dim"] * (cfg["syn_layers"] + 1))
    assert out["camera"].shape == (batch, 2)
    assert bool(jnp.all(jnp.isfinite(out["image"])))
    print("KERNEL_OK")
</pallas_src>

<mosaic_0001>
module attributes {stable_mosaic.version = 11 : i64} {
  func.func @kernel(%arg0: memref<2x32xf32, #tpu.memory_space<vmem>>, %arg1: memref<32x32xf32, #tpu.memory_space<vmem>>, %arg2: memref<1x32xf32, #tpu.memory_space<vmem>>, %arg3: memref<32x32xf32, #tpu.memory_space<vmem>>, %arg4: memref<1x32xf32, #tpu.memory_space<vmem>>, %arg5: memref<32x160xf32, #tpu.memory_space<vmem>>, %arg6: memref<1x160xf32, #tpu.memory_space<vmem>>, %arg7: memref<2x160xf32, #tpu.memory_space<vmem>>) attributes {dimension_semantics = [], scalar_prefetch = 0 : i64, scratch_operands = 0 : i64, tpu.core_type = #tpu.core_type<tc>} {
    %c0 = arith.constant 0 : index
    %c0_0 = arith.constant 0 : index
    %0 = vector.load %arg0[%c0, %c0_0] : memref<2x32xf32, #tpu.memory_space<vmem>>, vector<2x32xf32>
    %c0_1 = arith.constant 0 : index
    %c0_2 = arith.constant 0 : index
    %1 = vector.load %arg1[%c0_1, %c0_2] : memref<32x32xf32, #tpu.memory_space<vmem>>, vector<32x32xf32>
    %c0_3 = arith.constant 0 : index
    %c0_4 = arith.constant 0 : index
    %2 = vector.load %arg2[%c0_3, %c0_4] : memref<1x32xf32, #tpu.memory_space<vmem>>, vector<1x32xf32>
    %cst = arith.constant dense<0.000000e+00> : vector<2x32xf32>
    %3 = tpu.matmul %0, %1, %cst {dimension_numbers = #tpu.dot_dimension_numbers<[1], [0], [0], [1], [0, 0, 1, 1], [], []>} : vector<2x32xf32>, vector<32x32xf32>, vector<2x32xf32> -> vector<2x32xf32>
    %4 = vector.broadcast %2 : vector<1x32xf32> to vector<2x32xf32>
    %5 = arith.addf %3, %4 : vector<2x32xf32>
    %cst_5 = arith.constant 0.000000e+00 : f32
    %6 = vector.broadcast %cst_5 : f32 to vector<2x32xf32>
    %7 = arith.cmpf oge, %5, %6 : vector<2x32xf32>
    %cst_6 = arith.constant 2.000000e-01 : f32
    %8 = vector.broadcast %cst_6 : f32 to vector<2x32xf32>
    %9 = arith.mulf %8, %5 : vector<2x32xf32>
    %10 = arith.select %7, %5, %9 : vector<2x32xi1>, vector<2x32xf32>
    %c0_7 = arith.constant 0 : index
    %c0_8 = arith.constant 0 : index
    %11 = vector.load %arg3[%c0_7, %c0_8] : memref<32x32xf32, #tpu.memory_space<vmem>>, vector<32x32xf32>
    %c0_9 = arith.constant 0 : index
    %c0_10 = arith.constant 0 : index
    %12 = vector.load %arg4[%c0_9, %c0_10] : memref<1x32xf32, #tpu.memory_space<vmem>>, vector<1x32xf32>
    %cst_11 = arith.constant dense<0.000000e+00> : vector<2x32xf32>
    %13 = tpu.matmul %10, %11, %cst_11 {dimension_numbers = #tpu.dot_dimension_numbers<[1], [0], [0], [1], [0, 0, 1, 1], [], []>} : vector<2x32xf32>, vector<32x32xf32>, vector<2x32xf32> -> vector<2x32xf32>
    %14 = vector.broadcast %12 : vector<1x32xf32> to vector<2x32xf32>
    %15 = arith.addf %13, %14 : vector<2x32xf32>
    %cst_12 = arith.constant 0.000000e+00 : f32
    %16 = vector.broadcast %cst_12 : f32 to vector<2x32xf32>
    %17 = arith.cmpf oge, %15, %16 : vector<2x32xf32>
    %cst_13 = arith.constant 2.000000e-01 : f32
    %18 = vector.broadcast %cst_13 : f32 to vector<2x32xf32>
    %19 = arith.mulf %18, %15 : vector<2x32xf32>
    %20 = arith.select %17, %15, %19 : vector<2x32xi1>, vector<2x32xf32>
    %c0_14 = arith.constant 0 : index
    %c0_15 = arith.constant 0 : index
    %21 = vector.load %arg5[%c0_14, %c0_15] : memref<32x160xf32, #tpu.memory_space<vmem>>, vector<32x160xf32>
    %c0_16 = arith.constant 0 : index
    %c0_17 = arith.constant 0 : index
    %22 = vector.load %arg6[%c0_16, %c0_17] : memref<1x160xf32, #tpu.memory_space<vmem>>, vector<1x160xf32>
    %cst_18 = arith.constant dense<0.000000e+00> : vector<2x160xf32>
    %23 = tpu.matmul %20, %21, %cst_18 {dimension_numbers = #tpu.dot_dimension_numbers<[1], [0], [0], [1], [0, 0, 1, 1], [], []>} : vector<2x32xf32>, vector<32x160xf32>, vector<2x160xf32> -> vector<2x160xf32>
    %24 = vector.broadcast %22 : vector<1x160xf32> to vector<2x160xf32>
    %25 = arith.addf %23, %24 : vector<2x160xf32>
    %cst_19 = arith.constant 0.000000e+00 : f32
    %26 = vector.broadcast %cst_19 : f32 to vector<2x160xf32>
    %27 = arith.cmpf oge, %25, %26 : vector<2x160xf32>
    %cst_20 = arith.constant 2.000000e-01 : f32
    %28 = vector.broadcast %cst_20 : f32 to vector<2x160xf32>
    %29 = arith.mulf %28, %25 : vector<2x160xf32>
    %30 = arith.select %27, %25, %29 : vector<2x160xi1>, vector<2x160xf32>
    %c0_21 = arith.constant 0 : index
    %c0_22 = arith.constant 0 : index
    %31 = vector.load %arg7[%c0_21, %c0_22] : memref<2x160xf32, #tpu.memory_space<vmem>>, vector<2x160xf32>
    tpu.vector_store %arg7[%c0_21, %c0_22], %30 {strides = array<i32>} : memref<2x160xf32, #tpu.memory_space<vmem>>, vector<2x160xf32>,
    return
  }
}

</mosaic_0001>

<llo_original>
// kernel: tpu_custom_call.1
$region0: #{tpu_custom_call.1}
  #allocation0 [shape = 'u32[]', space=smem, size = 0x4, offset = 0x4, fixed_abs, tag = 'smem constant byte address 0x4 - core index']
  #allocation1 [shape = 'u32[72,128]{1,0:T(1,128)}', space=vmem, size = 0x9000, scoped, tag = 'internal scratch']
  %s0 = inlined_call_operand.hbm [shape: f32[2,32], index: 0, kind: input, shape index: {}]
  %s1 = inlined_call_operand.hbm [shape: f32[32,32], index: 1, kind: input, shape index: {}]
  %s2 = inlined_call_operand.vmem [shape: f32[1,32], index: 2, kind: input, shape index: {}]
  %s3 = inlined_call_operand.hbm [shape: f32[32,32], index: 3, kind: input, shape index: {}]
  %s4 = inlined_call_operand.hbm [shape: f32[1,32], index: 4, kind: input, shape index: {}]
  %s5 = inlined_call_operand.hbm [shape: f32[32,160], index: 5, kind: input, shape index: {}]
  %s6 = inlined_call_operand.vmem [shape: f32[1,160], index: 6, kind: input, shape index: {}]
  %s7 = inlined_call_operand.hbm [shape: f32[2,160], index: 7, kind: output, shape index: {}]
  %s8 = sld [smem:[#allocation0]]
  $region58: #{tpu_custom_call.1} parent=0
    _
  %s10 = ssub.s32 1, %s8
  %s11 = scalar_select 0, %s10, %s8
  $region1: #{tpu_custom_call.1} parent=0
    #allocation2 [shape = 'u8[1024]{0}', space=vmem, size = 0x400, scoped, tag = 'input window, operand 0, single buffered']
    #allocation3 [shape = 's32[1]{0}', space=sflag, size = 0x4, scoped, tag = 'scoped memory for tpu_custom_call.1']
    #allocation4 [shape = 's32[1]{0}', space=sflag, size = 0x4, scoped, tag = 'scoped memory for tpu_custom_call.1']
    #allocation5 [shape = 'u8[16384]{0}', space=vmem, size = 0x4000, scoped, tag = 'input window, operand 1, single buffered']
    #allocation6 [shape = 's32[1]{0}', space=sflag, size = 0x4, scoped, tag = 'scoped memory for tpu_custom_call.1']
    #allocation7 [shape = 'u8[16384]{0}', space=vmem, size = 0x4000, scoped, tag = 'input window, operand 3, single buffered']
    #allocation8 [shape = 'u8[512]{0}', space=vmem, size = 0x400, scoped, tag = 'input window, operand 4, single buffered']
    #allocation9 [shape = 's32[1]{0}', space=sflag, size = 0x4, scoped, tag = 'scoped memory for tpu_custom_call.1']
    #allocation10 [shape = 'u8[32768]{0}', space=vmem, size = 0x8000, scoped, tag = 'input window, operand 5, single buffered']
    #allocation11 [shape = 'u8[2048]{0}', space=vmem, size = 0x800, scoped, tag = 'output window, operand 0, single buffered']
    %12 = vsyncpa [#allocation3], 0
    %13 = vsyncpa [#allocation6], 0
    %14 = vsyncpa [#allocation9], 0
    %15 = vsyncpa [#allocation4], 0
    // Predicated region
    $region2: #{tpu_custom_call.1} parent=1 // pred_check
      _
    $region3: #{tpu_custom_call.1} parent=1 // pred_check_branch
      %17 = sbr.rel (0) target = $region5
    $region4: #{tpu_custom_call.1} parent=1 // pred_region
      %19 = vsyncadd [#allocation3], 0
      %s21 = sshll.u32 %s0, 4
      %s22 = int_to_ptr.hbm [resolvable:$true] %s21
      %s23 = sshll.u32 [#allocation2], 4
      %s24 = int_to_ptr.vmem [resolvable:$true] %s23
      %26 = dma.hbm_to_vmem [thread:$0]  %s22, 32, %s24, [#allocation3]
    $region5: #{tpu_custom_call.1} parent=1 // pred_fallthru
      _
    // Predicated region
    $region6: #{tpu_custom_call.1} parent=1 // pred_check
      _
    $region7: #{tpu_custom_call.1} parent=1 // pred_check_branch
      %28 = sbr.rel (0) target = $region9
    $region8: #{tpu_custom_call.1} parent=1 // pred_region
      %30 = vsyncadd [#allocation6], 0
      %s31 = sshll.u32 %s1, 4
      %s32 = int_to_ptr.hbm [resolvable:$true] %s31
      %s33 = sshll.u32 [#allocation5], 4
      %s34 = int_to_ptr.vmem [resolvable:$true] %s33
      %39 = dma.hbm_to_vmem [thread:$0]  %s32, 512, %s34, [#allocation6], 128, 128, 8
    $region9: #{tpu_custom_call.1} parent=1 // pred_fallthru
      _
    // Predicated region
    $region10: #{tpu_custom_call.1} parent=1 // pred_check
      _
    $region11: #{tpu_custom_call.1} parent=1 // pred_check_branch
      %41 = sbr.rel (0) target = $region13
    $region12: #{tpu_custom_call.1} parent=1 // pred_region
      _
    $region13: #{tpu_custom_call.1} parent=1 // pred_fallthru
      _
    // Predicated region
    $region14: #{tpu_custom_call.1} parent=1 // pred_check
      _
    $region15: #{tpu_custom_call.1} parent=1 // pred_check_branch
      %43 = sbr.rel (0) target = $region17
    $region16: #{tpu_custom_call.1} parent=1 // pred_region
      %45 = vsyncadd [#allocation6], 0
      %s46 = sshll.u32 %s3, 4
      %s47 = int_to_ptr.hbm [resolvable:$true] %s46
      %s48 = sshll.u32 [#allocation7], 4
      %s49 = int_to_ptr.vmem [resolvable:$true] %s48
      %54 = dma.hbm_to_vmem [thread:$0]  %s47, 512, %s49, [#allocation6], 128, 128, 8
    $region17: #{tpu_custom_call.1} parent=1 // pred_fallthru
      _
    // Predicated region
    $region18: #{tpu_custom_call.1} parent=1 // pred_check
      _
    $region19: #{tpu_custom_call.1} parent=1 // pred_check_branch
      %56 = sbr.rel (0) target = $region21
    $region20: #{tpu_custom_call.1} parent=1 // pred_region
      %58 = vsyncadd [#allocation9], 0
      %s60 = sshll.u32 %s4, 4
      %s61 = int_to_ptr.hbm [resolvable:$true] %s60
      %s62 = sshll.u32 [#allocation8], 4
      %s63 = int_to_ptr.vmem [resolvable:$true] %s62
      %65 = dma.hbm_to_vmem [thread:$0]  %s61, 16, %s63, [#allocation9]
    $region21: #{tpu_custom_call.1} parent=1 // pred_fallthru
      _
    // Predicated region
    $region22: #{tpu_custom_call.1} parent=1 // pred_check
      _
    $region23: #{tpu_custom_call.1} parent=1 // pred_check_branch
      %67 = sbr.rel (0) target = $region25
    $region24: #{tpu_custom_call.1} parent=1 // pred_region
      %69 = vsyncadd [#allocation9], 0
      %s70 = sshll.u32 %s5, 4
      %s71 = int_to_ptr.hbm [resolvable:$true] %s70
      %s72 = sshll.u32 [#allocation10], 4
      %s73 = int_to_ptr.vmem [resolvable:$true] %s72
      %78 = dma.hbm_to_vmem [thread:$0]  %s71, 1024, %s73, [#allocation9], 256, 256, 16
    $region25: #{tpu_custom_call.1} parent=1 // pred_fallthru
      _
    // Predicated region
    $region26: #{tpu_custom_call.1} parent=1 // pred_check
      _
    $region27: #{tpu_custom_call.1} parent=1 // pred_check_branch
      %80 = sbr.rel (0) target = $region29
    $region28: #{tpu_custom_call.1} parent=1 // pred_region
      _
    $region29: #{tpu_custom_call.1} parent=1 // pred_fallthru
      _
    // Predicated region
    $region30: #{tpu_custom_call.1} parent=1 // pred_check
      _
    $region31: #{tpu_custom_call.1} parent=1 // pred_check_branch
      %82 = sbr.rel (0) target = $region33
    $region32: #{tpu_custom_call.1} parent=1 // pred_region
      %84 = dma.done [#allocation3], 32
    $region33: #{tpu_custom_call.1} parent=1 // pred_fallthru
      _
    // Predicated region
    $region34: #{tpu_custom_call.1} parent=1 // pred_check
      _
    $region35: #{tpu_custom_call.1} parent=1 // pred_check_branch
      %86 = sbr.rel (0) target = $region37
    $region36: #{tpu_custom_call.1} parent=1 // pred_region
      %88 = dma.done [#allocation6], 512
    $region37: #{tpu_custom_call.1} parent=1 // pred_fallthru
      _
    // Predicated region
    $region38: #{tpu_custom_call.1} parent=1 // pred_check
      _
    $region39: #{tpu_custom_call.1} parent=1 // pred_check_branch
      %90 = sbr.rel (0) target = $region41
    $region40: #{tpu_custom_call.1} parent=1 // pred_region
      %92 = dma.done [#allocation6], 512
    $region41: #{tpu_custom_call.1} parent=1 // pred_fallthru
      _
    // Predicated region
    $region42: #{tpu_custom_call.1} parent=1 // pred_check
      _
    $region43: #{tpu_custom_call.1} parent=1 // pred_check_branch
      %94 = sbr.rel (0) target = $region45
    $region44: #{tpu_custom_call.1} parent=1 // pred_region
      %96 = dma.done [#allocation9], 16
    $region45: #{tpu_custom_call.1} parent=1 // pred_fallthru
      _
    // Predicated region
    $region46: #{tpu_custom_call.1} parent=1 // pred_check
      _
    $region47: #{tpu_custom_call.1} parent=1 // pred_check_branch
      %98 = sbr.rel (0) target = $region49
    $region48: #{tpu_custom_call.1} parent=1 // pred_region
      %100 = dma.done [#allocation9], 1024
    $region49: #{tpu_custom_call.1} parent=1 // pred_fallthru
      _
    %v101 = vld [vmem:[#allocation2] sm:$0x3]
    %v102 = vld [vmem:[#allocation5] sm:$0xff]
    %v103 = vld [vmem:[#allocation5 + $0x8] sm:$0xff]
    %v104 = vld [vmem:[#allocation5 + $0x10] sm:$0xff]
    %v105 = vld [vmem:[#allocation5 + $0x18] sm:$0xff]
    %v106 = vld [vmem:[%s2] sm:$0x1]
    %v108 = vperm.slane %v106, 0
    %vm110 = vcmask 261120
    %v112 = vsel %vm110, %v101, 0
    %114 = vmatpush.msra.mxu0 0.0
    %115 = vmatpush.msra.mxu0 0.0
    %116 = vmatpush.msra.mxu0 0.0
    %117 = vmatpush.msra.mxu0 0.0
    %118 = vmatpush.msra.mxu0 0.0
    %119 = vmatpush.msra.mxu0 0.0
    %120 = vmatpush.msra.mxu0 0.0
    %121 = vmatpush.msra.mxu0 0.0
    %122 = vmatpush.msra.mxu0 0.0
    %123 = vmatpush.msra.mxu0 0.0
    %124 = vmatpush.msra.mxu0 0.0
    %125 = vmatpush.msra.mxu0 0.0
    %126 = vmatpush.msra.mxu0 %v105
    %127 = vmatpush.msra.mxu0 %v104
    %128 = vmatpush.msra.mxu0 %v103
    %129 = vmatpush.msra.mxu0 %v102
    %130 = vmatmul.f32.gmra.mxu0 %v112
    %v131 = vpop.f32.mrf.mxu0
    %v132 = vadd.f32 %v108, %v131
    %133 = vdwg.mxu0
    %vm134 = vcmp.ge.f32.partialorder %v132, 0.0
    %v135 = vmul.f32 %v132, 0.2
    %v136 = vsel %vm134, %v132, %v135
    %v137 = vld [vmem:[#allocation7] sm:$0xff]
    %v138 = vld [vmem:[#allocation7 + $0x8] sm:$0xff]
    %v139 = vld [vmem:[#allocation7 + $0x10] sm:$0xff]
    %v140 = vld [vmem:[#allocation7 + $0x18] sm:$0xff]
    %v141 = vld [vmem:[#allocation8] sm:$0x1]
    %v143 = vperm.slane %v141, 0
    %v146 = vsel %vm110, %v136, 0
    %148 = vmatpush.msra.mxu0 0.0
    %149 = vmatpush.msra.mxu0 0.0
    %150 = vmatpush.msra.mxu0 0.0
    %151 = vmatpush.msra.mxu0 0.0
    %152 = vmatpush.msra.mxu0 0.0
    %153 = vmatpush.msra.mxu0 0.0
    %154 = vmatpush.msra.mxu0 0.0
    %155 = vmatpush.msra.mxu0 0.0
    %156 = vmatpush.msra.mxu0 0.0
    %157 = vmatpush.msra.mxu0 0.0
    %158 = vmatpush.msra.mxu0 0.0
    %159 = vmatpush.msra.mxu0 0.0
    %160 = vmatpush.msra.mxu0 %v140
    %161 = vmatpush.msra.mxu0 %v139
    %162 = vmatpush.msra.mxu0 %v138
    %163 = vmatpush.msra.mxu0 %v137
    %164 = vmatmul.f32.gmra.mxu0 %v146
    %v165 = vpop.f32.mrf.mxu0
    %v166 = vadd.f32 %v143, %v165
    %167 = vdwg.mxu0
    %vm168 = vcmp.ge.f32.partialorder %v166, 0.0
    %v169 = vmul.f32 %v166, 0.2
    %v170 = vsel %vm168, %v166, %v169
    %v171 = vld [vmem:[#allocation10] sm:$0xff]
    %v172 = vld [vmem:[#allocation10 + $0x8] sm:$0xff]
    %v173 = vld [vmem:[#allocation10 + $0x10] sm:$0xff]
    %v174 = vld [vmem:[#allocation10 + $0x18] sm:$0xff]
    %v175 = vld [vmem:[#allocation10 + $0x20] sm:$0xff]
    %v176 = vld [vmem:[#allocation10 + $0x28] sm:$0xff]
    %v177 = vld [vmem:[#allocation10 + $0x30] sm:$0xff]
    %v178 = vld [vmem:[#allocation10 + $0x38] sm:$0xff]
    %v179 = vld [vmem:[%s6] sm:$0x3]
    %v181 = vperm.slane %v179, 0
    %v182 = vperm.slane %v179, 1
    %v186 = vsel %vm110, %v170, 0
    %188 = vmatpush.msra.mxu0 0.0
    %189 = vmatpush.msra.mxu0 0.0
    %190 = vmatpush.msra.mxu0 0.0
    %191 = vmatpush.msra.mxu0 0.0
    %192 = vmatpush.msra.mxu0 0.0
    %193 = vmatpush.msra.mxu0 0.0
    %194 = vmatpush.msra.mxu0 0.0
    %195 = vmatpush.msra.mxu0 0.0
    %196 = vmatpush.msra.mxu0 0.0
    %197 = vmatpush.msra.mxu0 0.0
    %198 = vmatpush.msra.mxu0 0.0
    %199 = vmatpush.msra.mxu0 0.0
    %200 = vmatpush.msra.mxu0 %v177
    %201 = vmatpush.msra.mxu0 %v175
    %202 = vmatpush.msra.mxu0 %v173
    %203 = vmatpush.msra.mxu0 %v171
    %204 = vmatmul.f32.gmra.mxu0 %v186
    %v205 = vpop.f32.mrf.mxu0
    %v206 = vadd.f32 %v181, %v205
    %207 = vdwg.mxu0
    %208 = vmatpush.msra.mxu0 0.0
    %209 = vmatpush.msra.mxu0 0.0
    %210 = vmatpush.msra.mxu0 0.0
    %211 = vmatpush.msra.mxu0 0.0
    %212 = vmatpush.msra.mxu0 0.0
    %213 = vmatpush.msra.mxu0 0.0
    %214 = vmatpush.msra.mxu0 0.0
    %215 = vmatpush.msra.mxu0 0.0
    %216 = vmatpush.msra.mxu0 0.0
    %217 = vmatpush.msra.mxu0 0.0
    %218 = vmatpush.msra.mxu0 0.0
    %219 = vmatpush.msra.mxu0 0.0
    %220 = vmatpush.msra.mxu0 %v178
    %221 = vmatpush.msra.mxu0 %v176
    %222 = vmatpush.msra.mxu0 %v174
    %223 = vmatpush.msra.mxu0 %v172
    %224 = vmatmul.f32.gmra.mxu0 %v186
    %v225 = vpop.f32.mrf.mxu0
    %v226 = vadd.f32 %v182, %v225
    %227 = vdwg.mxu0
    %vm228 = vcmp.ge.f32.partialorder %v206, 0.0
    %vm229 = vcmp.ge.f32.partialorder %v226, 0.0
    %v230 = vmul.f32 %v206, 0.2
    %v231 = vmul.f32 %v226, 0.2
    %v232 = vsel %vm228, %v206, %v230
    %v233 = vsel %vm229, %v226, %v231
    %v236 = vrot.slane %v233, 6
    %vm237 = vcmask 1041408
    %v238 = vsel %vm237, %v232, %v236
    %vm240 = vcmask 257026
    %vm241 = vmor %vm240, %vm237
    %242 = vst.msk [vmem:[#allocation11] sm:$0xf] %vm241, %v238
    // Predicated region
    $region50: #{tpu_custom_call.1} parent=1 // pred_check
      _
    $region51: #{tpu_custom_call.1} parent=1 // pred_check_branch
      %244 = sbr.rel (0) target = $region53
    $region52: #{tpu_custom_call.1} parent=1 // pred_region
      %246 = vsyncadd [#allocation4], 0
      %s248 = sshll.u32 [#allocation11], 4
      %s249 = int_to_ptr.vmem [resolvable:$true] %s248
      %s250 = sshll.u32 %s7, 4
      %s251 = int_to_ptr.hbm [resolvable:$true] %s250
      %253 = dma.vmem_to_hbm [thread:$0]  %s249, 64, %s251, [#allocation4]
    $region53: #{tpu_custom_call.1} parent=1 // pred_fallthru
      _
    // Predicated region
    $region54: #{tpu_custom_call.1} parent=1 // pred_check
      _
    $region55: #{tpu_custom_call.1} parent=1 // pred_check_branch
      %255 = sbr.rel (0) target = $region57
    $region56: #{tpu_custom_call.1} parent=1 // pred_region
      %257 = dma.done [#allocation4], 64
    $region57: #{tpu_custom_call.1} parent=1 // pred_fallthru
      _
    %258 = vsyncpa [#allocation3], 1
    %259 = vsyncpa [#allocation6], 1
    %260 = vsyncpa [#allocation9], 1
    %261 = vsyncpa [#allocation4], 1

</llo_original>
